<compile_context>
chip_gen: v7x
topology: tpu7x:2x2x1
jax: 0.10.0
libtpu: 0.0.40
codegen_flags: <defaults>
</compile_context>

<pallas_src>
import jax
import jax.numpy as jnp
from jax import lax
from jax.experimental import pallas as pl
from jax.experimental.pallas import tpu as pltpu


def _round_up(x, m):
    return (x + m - 1) // m * m


def mlp_logsoftmax_kernel(x_ref, e_ref, w1x_ref, w1e_ref, b1_ref,
                          w2_ref, b2_ref, w3_ref, b3_ref, o_ref):
    # x_ref: (TILE_N, F), e_ref: (TILE_N, E) -- natural row-major HBM tiles.
    # Contract the feature axis directly so results are (H, TILE_N): samples on lanes.
    dn = (((1,), (1,)), ((), ()))  # contract dim 1 of lhs with dim 1 of rhs, no batch

    # first_lin over concat(x, emb): W1 @ [x; e]^T == W1_x @ x^T + W1_e @ e^T
    h = (lax.dot_general(w1x_ref[...], x_ref[...], dn,
                         preferred_element_type=jnp.float32)
         + lax.dot_general(w1e_ref[...], e_ref[...], dn,
                           preferred_element_type=jnp.float32)
         + b1_ref[...])                                   # (H, TILE_N)
    h = jnp.maximum(h, 0.0)
    # F.dropout(p=0.5, training=False) -> identity

    # hidden layer (num_layers=2 -> one hidden Linear) + ReLU, f32 accumulation
    h = jnp.dot(w2_ref[...].astype(jnp.float32), h,
                preferred_element_type=jnp.float32) + b2_ref[...]
    h = jnp.maximum(h, 0.0)
    # F.dropout(p=0.5, training=False) -> identity

    # last_lin
    logits = (jnp.dot(w3_ref[...].astype(jnp.float32), h,
                      preferred_element_type=jnp.float32)
              + b3_ref[...])                              # (C, TILE_N)

    # log_softmax over the class axis = sublane reduce over C rows (cheap XLU work).
    m = jnp.max(logits, axis=0, keepdims=True)
    s = logits - m
    lse = jnp.log(jnp.sum(jnp.exp(s), axis=0, keepdims=True))
    o_ref[...] = (s - lse).astype(o_ref.dtype)


def n2v_plus_features_forward(x, emb, params, *, tile_n=16384,
                              compute_dtype=jnp.bfloat16):
    """x: [N, features_num] (data.x), emb: [N, embedding_dim] (n2v.embedding.weight).
    params: torch-layout weights w* (out, in), biases b* (out,), f32.
    Returns log-probabilities [N, num_class] in f32.

    x/emb/weights are streamed in `compute_dtype` (bf16 by default -> ~2x less HBM
    traffic on this memory-bound kernel); matmul accumulation, biases and the
    log-softmax stay in f32."""
    n, f = x.shape
    n_e, e = emb.shape
    assert n_e == n
    h_dim, f_in = params["w1"].shape
    assert f_in == f + e
    c = params["w3"].shape[0]

    itemsize = jnp.dtype(compute_dtype).itemsize
    # (tn, F) input tiles are lane-padded to 128 in VMEM, costing tn*128*itemsize each;
    # keep (2 inputs x 2 pipeline buffers) under ~16 MiB of the 32 MiB scoped budget.
    max_tn_vmem = (16 * 1024 * 1024) // (4 * 128 * itemsize)

    n_pad = _round_up(n, 128)           # pad rows to a 128 multiple only (not full tile)
    tn = max(128, min(_round_up(tile_n, 128), max_tn_vmem, n_pad))
    grid = pl.cdiv(n_pad, tn)           # ragged last block handled by Pallas masking

    x_c = x.astype(compute_dtype)
    e_c = emb.astype(compute_dtype)
    if n_pad != n:                      # tiny copy; skipped entirely for aligned N
        x_c = jnp.pad(x_c, ((0, n_pad - n), (0, 0)))
        e_c = jnp.pad(e_c, ((0, n_pad - n), (0, 0)))

    w1x = params["w1"][:, :f].astype(compute_dtype)      # (H, F)
    w1e = params["w1"][:, f:].astype(compute_dtype)      # (H, E)
    w2 = params["w2"].astype(compute_dtype)              # (H, H)
    w3 = params["w3"].astype(compute_dtype)              # (C, H)
    b1 = params["b1"].reshape(h_dim, 1).astype(jnp.float32)
    b2 = params["b2"].reshape(h_dim, 1).astype(jnp.float32)
    b3 = params["b3"].reshape(c, 1).astype(jnp.float32)

    const = lambda i: (0, 0)            # weights/biases: VMEM-resident across row tiles
    row_in = lambda i: (i, 0)           # x/emb streamed per row tile ([N, F] layout)
    row_out = lambda i: (0, i)          # output streamed per row tile ([C, N] layout)

    flops = 2 * n_pad * (h_dim * (f + e) + h_dim * h_dim + h_dim * c)
    bytes_accessed = (n_pad * (f + e) * itemsize                              # x, emb
                      + (h_dim * (f + e) + h_dim * h_dim + c * h_dim) * itemsize  # weights
                      + (2 * h_dim + c) * 4                                   # biases
                      + n_pad * c * 4)                                        # output
    cost = pl.CostEstimate(flops=flops, transcendentals=n_pad * (c + 1),
                           bytes_accessed=bytes_accessed)

    out_T = pl.pallas_call(
        mlp_logsoftmax_kernel,
        out_shape=jax.ShapeDtypeStruct((c, n_pad), jnp.float32),
        grid=(grid,),
        in_specs=[
            pl.BlockSpec((tn, f), row_in),
            pl.BlockSpec((tn, e), row_in),
            pl.BlockSpec((h_dim, f), const),
            pl.BlockSpec((h_dim, e), const),
            pl.BlockSpec((h_dim, 1), const),
            pl.BlockSpec((h_dim, h_dim), const),
            pl.BlockSpec((h_dim, 1), const),
            pl.BlockSpec((c, h_dim), const),
            pl.BlockSpec((c, 1), const),
        ],
        out_specs=pl.BlockSpec((c, tn), row_out),
        compiler_params=pltpu.CompilerParams(
            # TODO(synk): on v7x try pltpu.CORE_PARALLEL on this axis (plain "parallel"
            # has near-zero codegen effect) once the grid has >= 2 row tiles per call.
            dimension_semantics=("parallel",),
            vmem_limit_bytes=32 * 1024 * 1024,
        ),
        cost_estimate=cost,
    )(x_c, e_c, w1x, w1e, b1, w2, b2, w3, b3)

    return out_T[:, :n].T               # back to [N, num_class]


def init_params(key, features_num=16, embedding_dim=16, hidden=32, num_class=2):
    """Deterministic init mimicking torch.nn.Linear (uniform +/- 1/sqrt(fan_in)).
    Weights kept in torch (out, in) layout; biases as (out,)."""
    ks = jax.random.split(key, 6)
    f_in = features_num + embedding_dim

    def lin(kw, kb, fan_in, fan_out):
        bound = 1.0 / jnp.sqrt(jnp.float32(fan_in))
        w = jax.random.uniform(kw, (fan_out, fan_in), jnp.float32, -bound, bound)
        b = jax.random.uniform(kb, (fan_out,), jnp.float32, -bound, bound)
        return w, b

    w1, b1 = lin(ks[0], ks[1], f_in, hidden)
    w2, b2 = lin(ks[2], ks[3], hidden, hidden)
    w3, b3 = lin(ks[4], ks[5], hidden, num_class)
    return dict(w1=w1, b1=b1, w2=w2, b2=b2, w3=w3, b3=b3)


def reference_forward(x, emb, p):
    xe = jnp.concatenate([x, emb], axis=1)
    h = jnp.maximum(xe @ p["w1"].T + p["b1"], 0.0)
    h = jnp.maximum(h @ p["w2"].T + p["b2"], 0.0)
    logits = h @ p["w3"].T + p["b3"]
    return jax.nn.log_softmax(logits, axis=-1)


if __name__ == "__main__":
    key = jax.random.PRNGKey(0)
    k_x, k_e, k_p = jax.random.split(key, 3)

    NUM_NODES, FEATURES, EMB_DIM, HIDDEN, NUM_CLASS = 8, 16, 16, 32, 2
    x = jax.random.normal(k_x, (NUM_NODES, FEATURES), jnp.float32)
    emb = jax.random.normal(k_e, (NUM_NODES, EMB_DIM), jnp.float32)  # n2v.embedding.weight
    params = init_params(k_p, FEATURES, EMB_DIM, HIDDEN, NUM_CLASS)

    ref = reference_forward(x, emb, params)

    # f32 streaming path: exactness check against the pure-JAX reference.
    out_f32 = n2v_plus_features_forward(x, emb, params, compute_dtype=jnp.float32)
    out_f32 = jax.block_until_ready(out_f32)
    assert out_f32.shape == (NUM_NODES, NUM_CLASS)
    assert jnp.allclose(out_f32, ref, atol=1e-5, rtol=1e-5)

    # default bf16 streaming path (f32 accumulation): loose tolerance vs f32 reference.
    out = n2v_plus_features_forward(x, emb, params)
    out = jax.block_until_ready(out)
    assert out.shape == (NUM_NODES, NUM_CLASS)
    assert jnp.allclose(out, ref, atol=5e-2, rtol=5e-2)

    print("KERNEL_OK")
</pallas_src>

<mosaic_0001>
module attributes {stable_mosaic.version = 11 : i64} {
  func.func @mlp_logsoftmax_kernel(%arg0: i32, %arg1: memref<128x16xf32, #tpu.memory_space<vmem>>, %arg2: memref<128x16xf32, #tpu.memory_space<vmem>>, %arg3: memref<32x16xf32, #tpu.memory_space<vmem>>, %arg4: memref<32x16xf32, #tpu.memory_space<vmem>>, %arg5: memref<32x1xf32, #tpu.memory_space<vmem>>, %arg6: memref<32x32xf32, #tpu.memory_space<vmem>>, %arg7: memref<32x1xf32, #tpu.memory_space<vmem>>, %arg8: memref<2x32xf32, #tpu.memory_space<vmem>>, %arg9: memref<2x1xf32, #tpu.memory_space<vmem>>, %arg10: memref<2x128xf32, #tpu.memory_space<vmem>>) attributes {dimension_semantics = [#tpu.dimension_semantics<parallel>], iteration_bounds = array<i64: 1>, scalar_prefetch = 0 : i64, scratch_operands = 0 : i64, tpu.core_type = #tpu.core_type<tc>, window_params = [{transform_indices = @transform_0, window_bounds = array<i64: 128, 16>}, {transform_indices = @transform_1, window_bounds = array<i64: 128, 16>}, {pipeline_mode = #tpu.pipeline_mode<synchronous>, transform_indices = @transform_2, window_bounds = array<i64: 32, 16>}, {pipeline_mode = #tpu.pipeline_mode<synchronous>, transform_indices = @transform_3, window_bounds = array<i64: 32, 16>}, {pipeline_mode = #tpu.pipeline_mode<synchronous>, transform_indices = @transform_4, window_bounds = array<i64: 32, 1>}, {pipeline_mode = #tpu.pipeline_mode<synchronous>, transform_indices = @transform_5, window_bounds = array<i64: 32, 32>}, {pipeline_mode = #tpu.pipeline_mode<synchronous>, transform_indices = @transform_6, window_bounds = array<i64: 32, 1>}, {pipeline_mode = #tpu.pipeline_mode<synchronous>, transform_indices = @transform_7, window_bounds = array<i64: 2, 32>}, {pipeline_mode = #tpu.pipeline_mode<synchronous>, transform_indices = @transform_8, window_bounds = array<i64: 2, 1>}, {transform_indices = @transform_9, window_bounds = array<i64: 2, 128>}]} {
    %c0 = arith.constant 0 : index
    %c0_0 = arith.constant 0 : index
    %0 = vector.load %arg3[%c0, %c0_0] : memref<32x16xf32, #tpu.memory_space<vmem>>, vector<32x16xf32>
    %c0_1 = arith.constant 0 : index
    %c0_2 = arith.constant 0 : index
    %1 = vector.load %arg1[%c0_1, %c0_2] : memref<128x16xf32, #tpu.memory_space<vmem>>, vector<128x16xf32>
    %cst = arith.constant dense<0.000000e+00> : vector<32x128xf32>
    %2 = tpu.matmul %0, %1, %cst {dimension_numbers = #tpu.dot_dimension_numbers<[1], [1], [0], [0], [0, 0, 1, 0], [], []>} : vector<32x16xf32>, vector<128x16xf32>, vector<32x128xf32> -> vector<32x128xf32>
    %c0_3 = arith.constant 0 : index
    %c0_4 = arith.constant 0 : index
    %3 = vector.load %arg4[%c0_3, %c0_4] : memref<32x16xf32, #tpu.memory_space<vmem>>, vector<32x16xf32>
    %c0_5 = arith.constant 0 : index
    %c0_6 = arith.constant 0 : index
    %4 = vector.load %arg2[%c0_5, %c0_6] : memref<128x16xf32, #tpu.memory_space<vmem>>, vector<128x16xf32>
    %cst_7 = arith.constant dense<0.000000e+00> : vector<32x128xf32>
    %5 = tpu.matmul %3, %4, %cst_7 {dimension_numbers = #tpu.dot_dimension_numbers<[1], [1], [0], [0], [0, 0, 1, 0], [], []>} : vector<32x16xf32>, vector<128x16xf32>, vector<32x128xf32> -> vector<32x128xf32>
    %6 = arith.addf %2, %5 : vector<32x128xf32>
    %c0_8 = arith.constant 0 : index
    %c0_9 = arith.constant 0 : index
    %7 = vector.load %arg5[%c0_8, %c0_9] : memref<32x1xf32, #tpu.memory_space<vmem>>, vector<32x1xf32>
    %8 = vector.broadcast %7 : vector<32x1xf32> to vector<32x128xf32>
    %9 = arith.addf %6, %8 : vector<32x128xf32>
    %cst_10 = arith.constant 0.000000e+00 : f32
    %10 = vector.broadcast %cst_10 : f32 to vector<32x128xf32>
    %11 = arith.maximumf %9, %10 : vector<32x128xf32>
    %c0_11 = arith.constant 0 : index
    %c0_12 = arith.constant 0 : index
    %12 = vector.load %arg6[%c0_11, %c0_12] : memref<32x32xf32, #tpu.memory_space<vmem>>, vector<32x32xf32>
    %cst_13 = arith.constant dense<0.000000e+00> : vector<32x128xf32>
    %13 = tpu.matmul %12, %11, %cst_13 {dimension_numbers = #tpu.dot_dimension_numbers<[1], [0], [0], [1], [0, 0, 1, 1], [], []>} : vector<32x32xf32>, vector<32x128xf32>, vector<32x128xf32> -> vector<32x128xf32>
    %c0_14 = arith.constant 0 : index
    %c0_15 = arith.constant 0 : index
    %14 = vector.load %arg7[%c0_14, %c0_15] : memref<32x1xf32, #tpu.memory_space<vmem>>, vector<32x1xf32>
    %15 = vector.broadcast %14 : vector<32x1xf32> to vector<32x128xf32>
    %16 = arith.addf %13, %15 : vector<32x128xf32>
    %cst_16 = arith.constant 0.000000e+00 : f32
    %17 = vector.broadcast %cst_16 : f32 to vector<32x128xf32>
    %18 = arith.maximumf %16, %17 : vector<32x128xf32>
    %c0_17 = arith.constant 0 : index
    %c0_18 = arith.constant 0 : index
    %19 = vector.load %arg8[%c0_17, %c0_18] : memref<2x32xf32, #tpu.memory_space<vmem>>, vector<2x32xf32>
    %cst_19 = arith.constant dense<0.000000e+00> : vector<2x128xf32>
    %20 = tpu.matmul %19, %18, %cst_19 {dimension_numbers = #tpu.dot_dimension_numbers<[1], [0], [0], [1], [0, 0, 1, 1], [], []>} : vector<2x32xf32>, vector<32x128xf32>, vector<2x128xf32> -> vector<2x128xf32>
    %c0_20 = arith.constant 0 : index
    %c0_21 = arith.constant 0 : index
    %21 = vector.load %arg9[%c0_20, %c0_21] : memref<2x1xf32, #tpu.memory_space<vmem>>, vector<2x1xf32>
    %22 = vector.broadcast %21 : vector<2x1xf32> to vector<2x128xf32>
    %23 = arith.addf %20, %22 : vector<2x128xf32>
    %cst_22 = arith.constant dense<0xFF800000> : vector<128xf32>
    %24 = vector.multi_reduction <maximumf>, %23, %cst_22 [0] : vector<2x128xf32> to vector<128xf32>
    %25 = vector.shape_cast %24 : vector<128xf32> to vector<1x128xf32>
    %26 = vector.broadcast %25 : vector<1x128xf32> to vector<2x128xf32>
    %27 = arith.subf %23, %26 : vector<2x128xf32>
    %28 = math.exp %27 : vector<2x128xf32>
    %cst_23 = arith.constant dense<0.000000e+00> : vector<128xf32>
    %29 = vector.multi_reduction <add>, %28, %cst_23 [0] : vector<2x128xf32> to vector<128xf32>
    %30 = vector.shape_cast %29 : vector<128xf32> to vector<1x128xf32>
    %31 = math.log %30 : vector<1x128xf32>
    %32 = vector.broadcast %31 : vector<1x128xf32> to vector<2x128xf32>
    %33 = arith.subf %27, %32 : vector<2x128xf32>
    %c0_24 = arith.constant 0 : index
    %c0_25 = arith.constant 0 : index
    %34 = vector.load %arg10[%c0_24, %c0_25] : memref<2x128xf32, #tpu.memory_space<vmem>>, vector<2x128xf32>
    tpu.vector_store %arg10[%c0_24, %c0_25], %33 {strides = array<i32>} : memref<2x128xf32, #tpu.memory_space<vmem>>, vector<2x128xf32>,
    return
  }
  func.func @transform_0(%arg0: i32) -> (i32, i32) {
    %c0_i32 = arith.constant 0 : i32
    %c0_i32_0 = arith.constant 0 : i32
    return %arg0, %c0_i32 : i32, i32
  }
  func.func @transform_1(%arg0: i32) -> (i32, i32) {
    %c0_i32 = arith.constant 0 : i32
    %c0_i32_0 = arith.constant 0 : i32
    return %arg0, %c0_i32 : i32, i32
  }
  func.func @transform_2(%arg0: i32) -> (i32, i32) {
    %c0_i32 = arith.constant 0 : i32
    %c0_i32_0 = arith.constant 0 : i32
    %c0_i32_1 = arith.constant 0 : i32
    return %c0_i32, %c0_i32_0 : i32, i32
  }
  func.func @transform_3(%arg0: i32) -> (i32, i32) {
    %c0_i32 = arith.constant 0 : i32
    %c0_i32_0 = arith.constant 0 : i32
    %c0_i32_1 = arith.constant 0 : i32
    return %c0_i32, %c0_i32_0 : i32, i32
  }
  func.func @transform_4(%arg0: i32) -> (i32, i32) {
    %c0_i32 = arith.constant 0 : i32
    %c0_i32_0 = arith.constant 0 : i32
    %c0_i32_1 = arith.constant 0 : i32
    return %c0_i32, %c0_i32_0 : i32, i32
  }
  func.func @transform_5(%arg0: i32) -> (i32, i32) {
    %c0_i32 = arith.constant 0 : i32
    %c0_i32_0 = arith.constant 0 : i32
    %c0_i32_1 = arith.constant 0 : i32
    return %c0_i32, %c0_i32_0 : i32, i32
  }
  func.func @transform_6(%arg0: i32) -> (i32, i32) {
    %c0_i32 = arith.constant 0 : i32
    %c0_i32_0 = arith.constant 0 : i32
    %c0_i32_1 = arith.constant 0 : i32
    return %c0_i32, %c0_i32_0 : i32, i32
  }
  func.func @transform_7(%arg0: i32) -> (i32, i32) {
    %c0_i32 = arith.constant 0 : i32
    %c0_i32_0 = arith.constant 0 : i32
    %c0_i32_1 = arith.constant 0 : i32
    return %c0_i32, %c0_i32_0 : i32, i32
  }
  func.func @transform_8(%arg0: i32) -> (i32, i32) {
    %c0_i32 = arith.constant 0 : i32
    %c0_i32_0 = arith.constant 0 : i32
    %c0_i32_1 = arith.constant 0 : i32
    return %c0_i32, %c0_i32_0 : i32, i32
  }
  func.func @transform_9(%arg0: i32) -> (i32, i32) {
    %c0_i32 = arith.constant 0 : i32
    %c0_i32_0 = arith.constant 0 : i32
    return %c0_i32, %arg0 : i32, i32
  }
}

</mosaic_0001>

<llo_original>
// kernel: tpu_custom_call.1
$region0: #{tpu_custom_call.1}
  #allocation0 [shape = 'u32[]', space=smem, size = 0x4, offset = 0x4, fixed_abs, tag = 'smem constant byte address 0x4 - core index']
  #allocation1 [shape = 'u32[144,128]{1,0:T(1,128)}', space=vmem, size = 0x12000, scoped, tag = 'internal scratch']
  %s0 = inlined_call_operand.vmem [shape: f32[128,16], index: 0, kind: input, shape index: {}]
  %s1 = inlined_call_operand.vmem [shape: f32[128,16], index: 1, kind: input, shape index: {}]
  %s2 = inlined_call_operand.vmem [shape: f32[32,16], index: 2, kind: input, shape index: {}]
  %s3 = inlined_call_operand.vmem [shape: f32[32,16], index: 3, kind: input, shape index: {}]
  %s4 = inlined_call_operand.vmem [shape: f32[32,1], index: 4, kind: input, shape index: {}]
  %s5 = inlined_call_operand.vmem [shape: f32[32,32], index: 5, kind: input, shape index: {}]
  %s6 = inlined_call_operand.vmem [shape: f32[32,1], index: 6, kind: input, shape index: {}]
  %s7 = inlined_call_operand.vmem [shape: f32[2,32], index: 7, kind: input, shape index: {}]
  %s8 = inlined_call_operand.vmem [shape: f32[2,1], index: 8, kind: input, shape index: {}]
  %s9 = inlined_call_operand.hbm [shape: f32[2,128], index: 9, kind: output, shape index: {}]
  %s10 = sld [smem:[#allocation0]]
  $region46: #{tpu_custom_call.1} parent=0
    _
  %s12 = ssub.s32 1, %s10
  %s13 = scalar_select 0, %s12, %s10
  $region1: #{tpu_custom_call.1} parent=0
    #allocation2 [shape = 'u8[1024]{0}', space=vmem, size = 0x400, scoped, tag = 'output window, operand 0, single buffered']
    #allocation3 [shape = 's32[1]{0}', space=sflag, size = 0x4, scoped, tag = 'scoped memory for tpu_custom_call.1']
    %14 = vsyncpa [#allocation3], 0
    // Predicated region
    $region2: #{tpu_custom_call.1} parent=1 // pred_check
      _
    $region3: #{tpu_custom_call.1} parent=1 // pred_check_branch
      %16 = sbr.rel (0) target = $region5
    $region4: #{tpu_custom_call.1} parent=1 // pred_region
      _
    $region5: #{tpu_custom_call.1} parent=1 // pred_fallthru
      _
    // Predicated region
    $region6: #{tpu_custom_call.1} parent=1 // pred_check
      _
    $region7: #{tpu_custom_call.1} parent=1 // pred_check_branch
      %18 = sbr.rel (0) target = $region9
    $region8: #{tpu_custom_call.1} parent=1 // pred_region
      _
    $region9: #{tpu_custom_call.1} parent=1 // pred_fallthru
      _
    // Predicated region
    $region10: #{tpu_custom_call.1} parent=1 // pred_check
      _
    $region11: #{tpu_custom_call.1} parent=1 // pred_check_branch
      %20 = sbr.rel (0) target = $region13
    $region12: #{tpu_custom_call.1} parent=1 // pred_region
      _
    $region13: #{tpu_custom_call.1} parent=1 // pred_fallthru
      _
    // Predicated region
    $region14: #{tpu_custom_call.1} parent=1 // pred_check
      _
    $region15: #{tpu_custom_call.1} parent=1 // pred_check_branch
      %22 = sbr.rel (0) target = $region17
    $region16: #{tpu_custom_call.1} parent=1 // pred_region
      _
    $region17: #{tpu_custom_call.1} parent=1 // pred_fallthru
      _
    // Predicated region
    $region18: #{tpu_custom_call.1} parent=1 // pred_check
      _
    $region19: #{tpu_custom_call.1} parent=1 // pred_check_branch
      %24 = sbr.rel (0) target = $region21
    $region20: #{tpu_custom_call.1} parent=1 // pred_region
      _
    $region21: #{tpu_custom_call.1} parent=1 // pred_fallthru
      _
    // Predicated region
    $region22: #{tpu_custom_call.1} parent=1 // pred_check
      _
    $region23: #{tpu_custom_call.1} parent=1 // pred_check_branch
      %26 = sbr.rel (0) target = $region25
    $region24: #{tpu_custom_call.1} parent=1 // pred_region
      _
    $region25: #{tpu_custom_call.1} parent=1 // pred_fallthru
      _
    // Predicated region
    $region26: #{tpu_custom_call.1} parent=1 // pred_check
      _
    $region27: #{tpu_custom_call.1} parent=1 // pred_check_branch
      %28 = sbr.rel (0) target = $region29
    $region28: #{tpu_custom_call.1} parent=1 // pred_region
      _
    $region29: #{tpu_custom_call.1} parent=1 // pred_fallthru
      _
    // Predicated region
    $region30: #{tpu_custom_call.1} parent=1 // pred_check
      _
    $region31: #{tpu_custom_call.1} parent=1 // pred_check_branch
      %30 = sbr.rel (0) target = $region33
    $region32: #{tpu_custom_call.1} parent=1 // pred_region
      _
    $region33: #{tpu_custom_call.1} parent=1 // pred_fallthru
      _
    // Predicated region
    $region34: #{tpu_custom_call.1} parent=1 // pred_check
      _
    $region35: #{tpu_custom_call.1} parent=1 // pred_check_branch
      %32 = sbr.rel (0) target = $region37
    $region36: #{tpu_custom_call.1} parent=1 // pred_region
      _
    $region37: #{tpu_custom_call.1} parent=1 // pred_fallthru
      _
    %v33 = vld [vmem:[%s2] sm:$0xff]
    %v34 = vld [vmem:[%s2 + $0x8] sm:$0xff]
    %v35 = vld [vmem:[%s2 + $0x10] sm:$0xff]
    %v36 = vld [vmem:[%s2 + $0x18] sm:$0xff]
    %v37 = vld [vmem:[%s0] sm:$0xff]
    %v38 = vld [vmem:[%s0 + $0x8] sm:$0xff]
    %v39 = vld [vmem:[%s0 + $0x10] sm:$0xff]
    %v40 = vld [vmem:[%s0 + $0x18] sm:$0xff]
    %v41 = vld [vmem:[%s0 + $0x20] sm:$0xff]
    %v42 = vld [vmem:[%s0 + $0x28] sm:$0xff]
    %v43 = vld [vmem:[%s0 + $0x30] sm:$0xff]
    %v44 = vld [vmem:[%s0 + $0x38] sm:$0xff]
    %v45 = vld [vmem:[%s0 + $0x40] sm:$0xff]
    %v46 = vld [vmem:[%s0 + $0x48] sm:$0xff]
    %v47 = vld [vmem:[%s0 + $0x50] sm:$0xff]
    %v48 = vld [vmem:[%s0 + $0x58] sm:$0xff]
    %v49 = vld [vmem:[%s0 + $0x60] sm:$0xff]
    %v50 = vld [vmem:[%s0 + $0x68] sm:$0xff]
    %v51 = vld [vmem:[%s0 + $0x70] sm:$0xff]
    %v52 = vld [vmem:[%s0 + $0x78] sm:$0xff]
    %v53 = vld [vmem:[%s3] sm:$0xff]
    %v54 = vld [vmem:[%s3 + $0x8] sm:$0xff]
    %v55 = vld [vmem:[%s3 + $0x10] sm:$0xff]
    %v56 = vld [vmem:[%s3 + $0x18] sm:$0xff]
    %v57 = vld [vmem:[%s1] sm:$0xff]
    %v58 = vld [vmem:[%s1 + $0x8] sm:$0xff]
    %v59 = vld [vmem:[%s1 + $0x10] sm:$0xff]
    %v60 = vld [vmem:[%s1 + $0x18] sm:$0xff]
    %v61 = vld [vmem:[%s1 + $0x20] sm:$0xff]
    %v62 = vld [vmem:[%s1 + $0x28] sm:$0xff]
    %v63 = vld [vmem:[%s1 + $0x30] sm:$0xff]
    %v64 = vld [vmem:[%s1 + $0x38] sm:$0xff]
    %v65 = vld [vmem:[%s1 + $0x40] sm:$0xff]
    %v66 = vld [vmem:[%s1 + $0x48] sm:$0xff]
    %v67 = vld [vmem:[%s1 + $0x50] sm:$0xff]
    %v68 = vld [vmem:[%s1 + $0x58] sm:$0xff]
    %v69 = vld [vmem:[%s1 + $0x60] sm:$0xff]
    %v70 = vld [vmem:[%s1 + $0x68] sm:$0xff]
    %v71 = vld [vmem:[%s1 + $0x70] sm:$0xff]
    %v72 = vld [vmem:[%s1 + $0x78] sm:$0xff]
    %vm73 = vcmask 130048
    %v75 = vsel %vm73, %v53, 0
    %v78 = vsel %vm73, %v54, 0
    %v81 = vsel %vm73, %v55, 0
    %v84 = vsel %vm73, %v56, 0
    %v87 = vsel %vm73, %v57, 0
    %v90 = vsel %vm73, %v58, 0
    %v93 = vsel %vm73, %v59, 0
    %v96 = vsel %vm73, %v60, 0
    %v99 = vsel %vm73, %v61, 0
    %v102 = vsel %vm73, %v62, 0
    %v105 = vsel %vm73, %v63, 0
    %v108 = vsel %vm73, %v64, 0
    %v111 = vsel %vm73, %v65, 0
    %v114 = vsel %vm73, %v66, 0
    %v117 = vsel %vm73, %v67, 0
    %v120 = vsel %vm73, %v68, 0
    %v123 = vsel %vm73, %v69, 0
    %v126 = vsel %vm73, %v70, 0
    %v129 = vsel %vm73, %v71, 0
    %v132 = vsel %vm73, %v72, 0
    %134 = vmatprep.subr.mxu0 0.0
    %135 = vmatpush1.xpose.msra.mxu0 %v87
    %136 = vmatprep.subr.mxu0 0.0
    %137 = vmatpush1.xpose.msra.mxu0 %v90
    %138 = vmatprep.subr.mxu0 0.0
    %139 = vmatpush1.xpose.msra.mxu0 %v93
    %140 = vmatprep.subr.mxu0 0.0
    %141 = vmatpush1.xpose.msra.mxu0 %v96
    %142 = vmatprep.subr.mxu0 0.0
    %143 = vmatpush1.xpose.msra.mxu0 %v99
    %144 = vmatprep.subr.mxu0 0.0
    %145 = vmatpush1.xpose.msra.mxu0 %v102
    %146 = vmatprep.subr.mxu0 0.0
    %147 = vmatpush1.xpose.msra.mxu0 %v105
    %148 = vmatprep.subr.mxu0 0.0
    %149 = vmatpush1.xpose.msra.mxu0 %v108
    %150 = vmatprep.subr.mxu0 0.0
    %151 = vmatpush1.xpose.msra.mxu0 %v111
    %152 = vmatprep.subr.mxu0 0.0
    %153 = vmatpush1.xpose.msra.mxu0 %v114
    %154 = vmatprep.subr.mxu0 0.0
    %155 = vmatpush1.xpose.msra.mxu0 %v117
    %156 = vmatprep.subr.mxu0 0.0
    %157 = vmatpush1.xpose.msra.mxu0 %v120
    %158 = vmatprep.subr.mxu0 0.0
    %159 = vmatpush1.xpose.msra.mxu0 %v123
    %160 = vmatprep.subr.mxu0 0.0
    %161 = vmatpush1.xpose.msra.mxu0 %v126
    %162 = vmatprep.subr.mxu0 0.0
    %163 = vmatpush1.xpose.msra.mxu0 %v129
    %164 = vmatprep.subr.mxu0 0.0
    %165 = vmatpush1.xpose.msra.mxu0 %v132
    %166 = vmatprep.subr.mxu0 0.0
    %167 = vmatpush1.xpose.msra.mxu0 0.0
    %168 = vmatprep.subr.mxu0 0.0
    %169 = vmatpush1.xpose.msra.mxu0 0.0
    %170 = vmatprep.subr.mxu0 0.0
    %171 = vmatpush1.xpose.msra.mxu0 0.0
    %172 = vmatprep.subr.mxu0 0.0
    %173 = vmatpush1.xpose.msra.mxu0 0.0
    %174 = vmatprep.subr.mxu0 0.0
    %175 = vmatpush1.xpose.msra.mxu0 0.0
    %176 = vmatprep.subr.mxu0 0.0
    %177 = vmatpush1.xpose.msra.mxu0 0.0
    %178 = vmatprep.subr.mxu0 0.0
    %179 = vmatpush1.xpose.msra.mxu0 0.0
    %180 = vmatprep.subr.mxu0 0.0
    %181 = vmatpush1.xpose.msra.mxu0 0.0
    %182 = vmatprep.subr.mxu0 0.0
    %183 = vmatpush1.xpose.msra.mxu0 0.0
    %184 = vmatprep.subr.mxu0 0.0
    %185 = vmatpush1.xpose.msra.mxu0 0.0
    %186 = vmatprep.subr.mxu0 0.0
    %187 = vmatpush1.xpose.msra.mxu0 0.0
    %188 = vmatprep.subr.mxu0 0.0
    %189 = vmatpush1.xpose.msra.mxu0 0.0
    %190 = vmatprep.subr.mxu0 0.0
    %191 = vmatpush1.xpose.msra.mxu0 0.0
    %192 = vmatprep.subr.mxu0 0.0
    %193 = vmatpush1.xpose.msra.mxu0 0.0
    %194 = vmatprep.subr.mxu0 0.0
    %195 = vmatpush1.xpose.msra.mxu0 0.0
    %196 = vmatprep.subr.mxu0 0.0
    %197 = vmatpush1.xpose.msra.mxu0 0.0
    %198 = vmatprep.mubr.f32.mxu0 0.0
    %199 = vmatmul.mubr.f32.gmra.mrb[0].mxu0 %v75
    %v200 = vpop.f32.mrb[0].mxu0
    %v201 = vadd.f32 0.0, %v200
    %v202 = vpop.f32.mrb[0].mxu0
    %203 = vmatprep.mubr.f32.mxu0 0.0
    %204 = vmatmul.mubr.f32.gmra.mrb[0].mxu0 %v78
    %v205 = vpop.f32.mrb[0].mxu0
    %v206 = vadd.f32 0.0, %v205
    %v207 = vpop.f32.mrb[0].mxu0
    %208 = vmatprep.mubr.f32.mxu0 0.0
    %209 = vmatmul.mubr.f32.gmra.mrb[0].mxu0 %v81
    %v210 = vpop.f32.mrb[0].mxu0
    %v211 = vadd.f32 0.0, %v210
    %v212 = vpop.f32.mrb[0].mxu0
    %213 = vmatprep.mubr.f32.mxu0 0.0
    %214 = vmatmul.mubr.f32.gmra.mrb[0].mxu0 %v84
    %v215 = vpop.f32.mrb[0].mxu0
    %v216 = vadd.f32 0.0, %v215
    %v217 = vpop.f32.mrb[0].mxu0
    %218 = vdwg.mxu0
    %v220 = vsel %vm73, %v33, 0
    %v223 = vsel %vm73, %v34, 0
    %v226 = vsel %vm73, %v35, 0
    %v229 = vsel %vm73, %v36, 0
    %v232 = vsel %vm73, %v37, 0
    %v235 = vsel %vm73, %v38, 0
    %v238 = vsel %vm73, %v39, 0
    %v241 = vsel %vm73, %v40, 0
    %v244 = vsel %vm73, %v41, 0
    %v247 = vsel %vm73, %v42, 0
    %v250 = vsel %vm73, %v43, 0
    %v253 = vsel %vm73, %v44, 0
    %v256 = vsel %vm73, %v45, 0
    %v259 = vsel %vm73, %v46, 0
    %v262 = vsel %vm73, %v47, 0
    %v265 = vsel %vm73, %v48, 0
    %v268 = vsel %vm73, %v49, 0
    %v271 = vsel %vm73, %v50, 0
    %v274 = vsel %vm73, %v51, 0
    %v277 = vsel %vm73, %v52, 0
    %279 = vmatprep.subr.mxu0 0.0
    %280 = vmatpush1.xpose.msra.mxu0 %v232
    %281 = vmatprep.subr.mxu0 0.0
    %282 = vmatpush1.xpose.msra.mxu0 %v235
    %283 = vmatprep.subr.mxu0 0.0
    %284 = vmatpush1.xpose.msra.mxu0 %v238
    %285 = vmatprep.subr.mxu0 0.0
    %286 = vmatpush1.xpose.msra.mxu0 %v241
    %287 = vmatprep.subr.mxu0 0.0
    %288 = vmatpush1.xpose.msra.mxu0 %v244
    %289 = vmatprep.subr.mxu0 0.0
    %290 = vmatpush1.xpose.msra.mxu0 %v247
    %291 = vmatprep.subr.mxu0 0.0
    %292 = vmatpush1.xpose.msra.mxu0 %v250
    %293 = vmatprep.subr.mxu0 0.0
    %294 = vmatpush1.xpose.msra.mxu0 %v253
    %295 = vmatprep.subr.mxu0 0.0
    %296 = vmatpush1.xpose.msra.mxu0 %v256
    %297 = vmatprep.subr.mxu0 0.0
    %298 = vmatpush1.xpose.msra.mxu0 %v259
    %299 = vmatprep.subr.mxu0 0.0
    %300 = vmatpush1.xpose.msra.mxu0 %v262
    %301 = vmatprep.subr.mxu0 0.0
    %302 = vmatpush1.xpose.msra.mxu0 %v265
    %303 = vmatprep.subr.mxu0 0.0
    %304 = vmatpush1.xpose.msra.mxu0 %v268
    %305 = vmatprep.subr.mxu0 0.0
    %306 = vmatpush1.xpose.msra.mxu0 %v271
    %307 = vmatprep.subr.mxu0 0.0
    %308 = vmatpush1.xpose.msra.mxu0 %v274
    %309 = vmatprep.subr.mxu0 0.0
    %310 = vmatpush1.xpose.msra.mxu0 %v277
    %311 = vmatprep.subr.mxu0 0.0
    %312 = vmatpush1.xpose.msra.mxu0 0.0
    %313 = vmatprep.subr.mxu0 0.0
    %314 = vmatpush1.xpose.msra.mxu0 0.0
    %315 = vmatprep.subr.mxu0 0.0
    %316 = vmatpush1.xpose.msra.mxu0 0.0
    %317 = vmatprep.subr.mxu0 0.0
    %318 = vmatpush1.xpose.msra.mxu0 0.0
    %319 = vmatprep.subr.mxu0 0.0
    %320 = vmatpush1.xpose.msra.mxu0 0.0
    %321 = vmatprep.subr.mxu0 0.0
    %322 = vmatpush1.xpose.msra.mxu0 0.0
    %323 = vmatprep.subr.mxu0 0.0
    %324 = vmatpush1.xpose.msra.mxu0 0.0
    %325 = vmatprep.subr.mxu0 0.0
    %326 = vmatpush1.xpose.msra.mxu0 0.0
    %327 = vmatprep.subr.mxu0 0.0
    %328 = vmatpush1.xpose.msra.mxu0 0.0
    %329 = vmatprep.subr.mxu0 0.0
    %330 = vmatpush1.xpose.msra.mxu0 0.0
    %331 = vmatprep.subr.mxu0 0.0
    %332 = vmatpush1.xpose.msra.mxu0 0.0
    %333 = vmatprep.subr.mxu0 0.0
    %334 = vmatpush1.xpose.msra.mxu0 0.0
    %335 = vmatprep.subr.mxu0 0.0
    %336 = vmatpush1.xpose.msra.mxu0 0.0
    %337 = vmatprep.subr.mxu0 0.0
    %338 = vmatpush1.xpose.msra.mxu0 0.0
    %339 = vmatprep.subr.mxu0 0.0
    %340 = vmatpush1.xpose.msra.mxu0 0.0
    %341 = vmatprep.subr.mxu0 0.0
    %342 = vmatpush1.xpose.msra.mxu0 0.0
    %343 = vmatprep.mubr.f32.mxu0 0.0
    %344 = vmatmul.mubr.f32.gmra.mrb[0].mxu0 %v220
    %v345 = vpop.f32.mrb[0].mxu0
    %v346 = vadd.f32 %v201, %v345
    %v347 = vpop.f32.mrb[0].mxu0
    %348 = vmatprep.mubr.f32.mxu0 0.0
    %349 = vmatmul.mubr.f32.gmra.mrb[0].mxu0 %v223
    %v350 = vpop.f32.mrb[0].mxu0
    %v351 = vadd.f32 %v206, %v350
    %v352 = vpop.f32.mrb[0].mxu0
    %353 = vmatprep.mubr.f32.mxu0 0.0
    %354 = vmatmul.mubr.f32.gmra.mrb[0].mxu0 %v226
    %v355 = vpop.f32.mrb[0].mxu0
    %v356 = vadd.f32 %v211, %v355
    %v357 = vpop.f32.mrb[0].mxu0
    %358 = vmatprep.mubr.f32.mxu0 0.0
    %359 = vmatmul.mubr.f32.gmra.mrb[0].mxu0 %v229
    %v360 = vpop.f32.mrb[0].mxu0
    %v361 = vadd.f32 %v216, %v360
    %v362 = vpop.f32.mrb[0].mxu0
    %363 = vdwg.mxu0
    %v364 = vld [vmem:[%s4] sm:$0xff]
    %v365 = vld [vmem:[%s4 + $0x8] sm:$0xff]
    %v366 = vld [vmem:[%s4 + $0x10] sm:$0xff]
    %v367 = vld [vmem:[%s4 + $0x18] sm:$0xff]
    %369 = vset.pattern.permute.xlu0 0
    %370 = vperm.xlu0 %369, %v364
    %v371 = vpop.permute.xlu0 %370
    %374 = vset.pattern.permute.xlu0 0
    %375 = vperm.xlu0 %374, %v365
    %v376 = vpop.permute.xlu0 %375
    %379 = vset.pattern.permute.xlu0 0
    %380 = vperm.xlu0 %379, %v366
    %v381 = vpop.permute.xlu0 %380
    %384 = vset.pattern.permute.xlu0 0
    %385 = vperm.xlu0 %384, %v367
    %v386 = vpop.permute.xlu0 %385
    %v388 = vadd.f32 %v346, %v371
    %v389 = vadd.f32 %v351, %v376
    %v390 = vadd.f32 %v356, %v381
    %v391 = vadd.f32 %v361, %v386
    %v392 = vmax.f32 %v388, 0.0
    %v393 = vmax.f32 %v389, 0.0
    %v394 = vmax.f32 %v390, 0.0
    %v395 = vmax.f32 %v391, 0.0
    %v396 = vld [vmem:[%s5] sm:$0xff]
    %v397 = vld [vmem:[%s5 + $0x8] sm:$0xff]
    %v398 = vld [vmem:[%s5 + $0x10] sm:$0xff]
    %v399 = vld [vmem:[%s5 + $0x18] sm:$0xff]
    %v400 = vld [vmem:[%s6] sm:$0xff]
    %v401 = vld [vmem:[%s6 + $0x8] sm:$0xff]
    %v402 = vld [vmem:[%s6 + $0x10] sm:$0xff]
    %v403 = vld [vmem:[%s6 + $0x18] sm:$0xff]
    %405 = vset.pattern.permute.xlu0 0
    %406 = vperm.xlu0 %405, %v400
    %v407 = vpop.permute.xlu0 %406
    %410 = vset.pattern.permute.xlu0 0
    %411 = vperm.xlu0 %410, %v401
    %v412 = vpop.permute.xlu0 %411
    %415 = vset.pattern.permute.xlu0 0
    %416 = vperm.xlu0 %415, %v402
    %v417 = vpop.permute.xlu0 %416
    %420 = vset.pattern.permute.xlu0 0
    %421 = vperm.xlu0 %420, %v403
    %v422 = vpop.permute.xlu0 %421
    %vm424 = vcmask 261120
    %v426 = vsel %vm424, %v396, 0
    %v429 = vsel %vm424, %v397, 0
    %v432 = vsel %vm424, %v398, 0
    %v435 = vsel %vm424, %v399, 0
    %437 = vmatprep.subr.mxu0 0.0
    %438 = vmatpush1.msra.mxu0 %v392
    %439 = vmatprep.subr.mxu0 0.0
    %440 = vmatpush1.msra.mxu0 %v393
    %441 = vmatprep.subr.mxu0 0.0
    %442 = vmatpush1.msra.mxu0 %v394
    %443 = vmatprep.subr.mxu0 0.0
    %444 = vmatpush1.msra.mxu0 %v395
    %445 = vmatprep.subr.mxu0 0.0
    %446 = vmatpush1.msra.mxu0 0.0
    %447 = vmatprep.subr.mxu0 0.0
    %448 = vmatpush1.msra.mxu0 0.0
    %449 = vmatprep.subr.mxu0 0.0
    %450 = vmatpush1.msra.mxu0 0.0
    %451 = vmatprep.subr.mxu0 0.0
    %452 = vmatpush1.msra.mxu0 0.0
    %453 = vmatprep.subr.mxu0 0.0
    %454 = vmatpush1.msra.mxu0 0.0
    %455 = vmatprep.subr.mxu0 0.0
    %456 = vmatpush1.msra.mxu0 0.0
    %457 = vmatprep.subr.mxu0 0.0
    %458 = vmatpush1.msra.mxu0 0.0
    %459 = vmatprep.subr.mxu0 0.0
    %460 = vmatpush1.msra.mxu0 0.0
    %461 = vmatprep.subr.mxu0 0.0
    %462 = vmatpush1.msra.mxu0 0.0
    %463 = vmatprep.subr.mxu0 0.0
    %464 = vmatpush1.msra.mxu0 0.0
    %465 = vmatprep.subr.mxu0 0.0
    %466 = vmatpush1.msra.mxu0 0.0
    %467 = vmatprep.subr.mxu0 0.0
    %468 = vmatpush1.msra.mxu0 0.0
    %469 = vmatprep.subr.mxu0 0.0
    %470 = vmatpush1.msra.mxu0 0.0
    %471 = vmatprep.subr.mxu0 0.0
    %472 = vmatpush1.msra.mxu0 0.0
    %473 = vmatprep.subr.mxu0 0.0
    %474 = vmatpush1.msra.mxu0 0.0
    %475 = vmatprep.subr.mxu0 0.0
    %476 = vmatpush1.msra.mxu0 0.0
    %477 = vmatprep.subr.mxu0 0.0
    %478 = vmatpush1.msra.mxu0 0.0
    %479 = vmatprep.subr.mxu0 0.0
    %480 = vmatpush1.msra.mxu0 0.0
    %481 = vmatprep.subr.mxu0 0.0
    %482 = vmatpush1.msra.mxu0 0.0
    %483 = vmatprep.subr.mxu0 0.0
    %484 = vmatpush1.msra.mxu0 0.0
    %485 = vmatprep.subr.mxu0 0.0
    %486 = vmatpush1.msra.mxu0 0.0
    %487 = vmatprep.subr.mxu0 0.0
    %488 = vmatpush1.msra.mxu0 0.0
    %489 = vmatprep.subr.mxu0 0.0
    %490 = vmatpush1.msra.mxu0 0.0
    %491 = vmatprep.subr.mxu0 0.0
    %492 = vmatpush1.msra.mxu0 0.0
    %493 = vmatprep.subr.mxu0 0.0
    %494 = vmatpush1.msra.mxu0 0.0
    %495 = vmatprep.subr.mxu0 0.0
    %496 = vmatpush1.msra.mxu0 0.0
    %497 = vmatprep.subr.mxu0 0.0
    %498 = vmatpush1.msra.mxu0 0.0
    %499 = vmatprep.subr.mxu0 0.0
    %500 = vmatpush1.msra.mxu0 0.0
    %501 = vmatprep.mubr.f32.mxu0 0.0
    %502 = vmatmul.mubr.f32.gmra.mrb[0].mxu0 %v426
    %v503 = vpop.f32.mrb[0].mxu0
    %v504 = vadd.f32 %v407, %v503
    %v505 = vpop.f32.mrb[0].mxu0
    %506 = vmatprep.mubr.f32.mxu0 0.0
    %507 = vmatmul.mubr.f32.gmra.mrb[0].mxu0 %v429
    %v508 = vpop.f32.mrb[0].mxu0
    %v509 = vadd.f32 %v412, %v508
    %v510 = vpop.f32.mrb[0].mxu0
    %511 = vmatprep.mubr.f32.mxu0 0.0
    %512 = vmatmul.mubr.f32.gmra.mrb[0].mxu0 %v432
    %v513 = vpop.f32.mrb[0].mxu0
    %v514 = vadd.f32 %v417, %v513
    %v515 = vpop.f32.mrb[0].mxu0
    %516 = vmatprep.mubr.f32.mxu0 0.0
    %517 = vmatmul.mubr.f32.gmra.mrb[0].mxu0 %v435
    %v518 = vpop.f32.mrb[0].mxu0
    %v519 = vadd.f32 %v422, %v518
    %v520 = vpop.f32.mrb[0].mxu0
    %521 = vdwg.mxu0
    %v522 = vmax.f32 %v504, 0.0
    %v523 = vmax.f32 %v509, 0.0
    %v524 = vmax.f32 %v514, 0.0
    %v525 = vmax.f32 %v519, 0.0
    %v526 = vld [vmem:[%s7] sm:$0x3]
    %v527 = vld [vmem:[%s8] sm:$0x3]
    %529 = vset.pattern.permute.xlu0 0
    %530 = vperm.xlu0 %529, %v527
    %v531 = vpop.permute.xlu0 %530
    %v534 = vsel %vm424, %v526, 0
    %536 = vmatprep.subr.mxu0 0.0
    %537 = vmatpush1.msra.mxu0 %v522
    %538 = vmatprep.subr.mxu0 0.0
    %539 = vmatpush1.msra.mxu0 %v523
    %540 = vmatprep.subr.mxu0 0.0
    %541 = vmatpush1.msra.mxu0 %v524
    %542 = vmatprep.subr.mxu0 0.0
    %543 = vmatpush1.msra.mxu0 %v525
    %544 = vmatprep.subr.mxu0 0.0
    %545 = vmatpush1.msra.mxu0 0.0
    %546 = vmatprep.subr.mxu0 0.0
    %547 = vmatpush1.msra.mxu0 0.0
    %548 = vmatprep.subr.mxu0 0.0
    %549 = vmatpush1.msra.mxu0 0.0
    %550 = vmatprep.subr.mxu0 0.0
    %551 = vmatpush1.msra.mxu0 0.0
    %552 = vmatprep.subr.mxu0 0.0
    %553 = vmatpush1.msra.mxu0 0.0
    %554 = vmatprep.subr.mxu0 0.0
    %555 = vmatpush1.msra.mxu0 0.0
    %556 = vmatprep.subr.mxu0 0.0
    %557 = vmatpush1.msra.mxu0 0.0
    %558 = vmatprep.subr.mxu0 0.0
    %559 = vmatpush1.msra.mxu0 0.0
    %560 = vmatprep.subr.mxu0 0.0
    %561 = vmatpush1.msra.mxu0 0.0
    %562 = vmatprep.subr.mxu0 0.0
    %563 = vmatpush1.msra.mxu0 0.0
    %564 = vmatprep.subr.mxu0 0.0
    %565 = vmatpush1.msra.mxu0 0.0
    %566 = vmatprep.subr.mxu0 0.0
    %567 = vmatpush1.msra.mxu0 0.0
    %568 = vmatprep.subr.mxu0 0.0
    %569 = vmatpush1.msra.mxu0 0.0
    %570 = vmatprep.subr.mxu0 0.0
    %571 = vmatpush1.msra.mxu0 0.0
    %572 = vmatprep.subr.mxu0 0.0
    %573 = vmatpush1.msra.mxu0 0.0
    %574 = vmatprep.subr.mxu0 0.0
    %575 = vmatpush1.msra.mxu0 0.0
    %576 = vmatprep.subr.mxu0 0.0
    %577 = vmatpush1.msra.mxu0 0.0
    %578 = vmatprep.subr.mxu0 0.0
    %579 = vmatpush1.msra.mxu0 0.0
    %580 = vmatprep.subr.mxu0 0.0
    %581 = vmatpush1.msra.mxu0 0.0
    %582 = vmatprep.subr.mxu0 0.0
    %583 = vmatpush1.msra.mxu0 0.0
    %584 = vmatprep.subr.mxu0 0.0
    %585 = vmatpush1.msra.mxu0 0.0
    %586 = vmatprep.subr.mxu0 0.0
    %587 = vmatpush1.msra.mxu0 0.0
    %588 = vmatprep.subr.mxu0 0.0
    %589 = vmatpush1.msra.mxu0 0.0
    %590 = vmatprep.subr.mxu0 0.0
    %591 = vmatpush1.msra.mxu0 0.0
    %592 = vmatprep.subr.mxu0 0.0
    %593 = vmatpush1.msra.mxu0 0.0
    %594 = vmatprep.subr.mxu0 0.0
    %595 = vmatpush1.msra.mxu0 0.0
    %596 = vmatprep.subr.mxu0 0.0
    %597 = vmatpush1.msra.mxu0 0.0
    %598 = vmatprep.subr.mxu0 0.0
    %599 = vmatpush1.msra.mxu0 0.0
    %600 = vmatprep.mubr.f32.mxu0 0.0
    %601 = vmatmul.mubr.f32.gmra.mrb[0].mxu0 %v534
    %v602 = vpop.f32.mrb[0].mxu0
    %v603 = vadd.f32 %v531, %v602
    %v604 = vpop.f32.mrb[0].mxu0
    %605 = vdwg.mxu0
    %vm606 = vcmask 1041408
    %v607 = vsel %vm606, %v603, -inf
    %v608 = vrot.slane %v607, 4
    %v609 = vmax.f32 %v607, %v608
    %v610 = vrot.slane %v609, 2
    %v611 = vmax.f32 %v609, %v610
    %v612 = vrot.slane %v611, 1
    %v613 = vmax.f32 %v611, %v612
    %v614 = vsub.f32 %v603, %v613
    %v615 = vmul.f32 %v614, 1.442695
    %v616 = vpow.pop %v615
    %v617 = vsel %vm606, %v616, 0.0
    %v618 = vrot.slane %v617, 4
    %v619 = vadd.f32 %v617, %v618
    %v620 = vrot.slane %v619, 2
    %v621 = vadd.f32 %v619, %v620
    %v622 = vrot.slane %v621, 1
    %v623 = vadd.f32 %v621, %v622
    %v624 = vlog2.pop %v623
    %v625 = vmul.f32 %v624, 0.6931472
    %v626 = vsub.f32 %v614, %v625
    %627 = vst [vmem:[#allocation2] sm:$0x3] %v626
    // Predicated region
    $region38: #{tpu_custom_call.1} parent=1 // pred_check
      _
    $region39: #{tpu_custom_call.1} parent=1 // pred_check_branch
      %629 = sbr.rel (0) target = $region41
    $region40: #{tpu_custom_call.1} parent=1 // pred_region
      %s631 = ssub.s32 32, 32
      %632 = vsyncadd [#allocation3], %s631
      %s634 = sshll.u32 [#allocation2], 4
      %s635 = int_to_ptr.vmem [resolvable:$true] %s634
      %637 = dma.vmem_to_hbm [thread:$0]  %s635, 32, %s9, [#allocation3]
    $region41: #{tpu_custom_call.1} parent=1 // pred_fallthru
      _
    // Predicated region
    $region42: #{tpu_custom_call.1} parent=1 // pred_check
      _
    $region43: #{tpu_custom_call.1} parent=1 // pred_check_branch
      %639 = sbr.rel (0) target = $region45
    $region44: #{tpu_custom_call.1} parent=1 // pred_region
      %640 = dma.done [#allocation3], 32
    $region45: #{tpu_custom_call.1} parent=1 // pred_fallthru
      _
    %641 = vsyncpa [#allocation3], 1

</llo_original>
